<compile_context>
chip_gen: v7x
topology: tpu7x:2x2x1
jax: 0.10.0
libtpu: 0.0.40
codegen_flags: <defaults>
</compile_context>

<pallas_src>
import functools
import math

import jax
import jax.numpy as jnp
from jax.experimental import pallas as pl
from jax.experimental.pallas import tpu as pltpu


# ---------------------------------------------------------------------------
# Kernel
# ---------------------------------------------------------------------------
def _softmax_approx_kernel(x_ref, s1_ref, w1_ref, b1_ref, a2_ref, b2_ref,
                           a3_ref, b3_ref, o_ref):
    """One (TR, NL) row tile; NL = F*N lanes hold F independent softmax rows.

    s1: (NL, GH) 0/1 segmented-sum + broadcast matrix (exact in bf16)
    w1, b1, b2: (1, GH) f32 per-lane layer-1 weight/biases (tiled per group)
    a2: (GH, GH) block-diagonal layer-2 weight
    a3: (GH, NL) fused layer-3 weight + broadcast-back-to-group-lanes
    b3: (1, 1) scalar layer-3 bias in SMEM.
    """
    x = x_ref[...].astype(jnp.float32)

    # exp_score_i = ReLU((x_i / 2 + 1)^3)                             -- VPU
    t = x * 0.5 + 1.0
    es = jnp.maximum(t * t * t, 0.0)                                  # (TR, NL)

    # Precision pin: s1/a2/a3 arrive in the chosen MLP dtype.
    #   bf16 path -> bf16 x bf16 with f32 accumulate = single-pass MXU matmul.
    #   f32 path  -> Mosaic's default f32 lowering (accurate multi-pass).
    wdt = s1_ref.dtype

    # Per-group sum, broadcast to every lane of its group's H-wide slot:
    #   ssum[r, g*H + k] = sum_{j in group g} es[r, j]
    # s1 is 0/1 (exact in bf16); only es is rounded on the fast path.
    ssum = jnp.dot(es.astype(wdt), s1_ref[...],
                   preferred_element_type=jnp.float32)                # (TR, GH)

    # Layer 1 is elementwise given the broadcast sums -> exact f32 on the VPU.
    h1 = jnp.maximum(ssum * w1_ref[...] + b1_ref[...], 0.0)           # (TR, GH)

    # Layers 2 & 3 on the MXU (block-diagonal weights).
    h2 = jnp.maximum(
        jnp.dot(h1.astype(wdt), a2_ref[...],
                preferred_element_type=jnp.float32) + b2_ref[...], 0.0)
    reci = (jnp.dot(h2.astype(wdt), a3_ref[...],
                    preferred_element_type=jnp.float32)
            + b3_ref[0, 0])                                           # (TR, NL)

    o_ref[...] = (es * reci).astype(o_ref.dtype)


# ---------------------------------------------------------------------------
# Sizing heuristics (generation-aware)
# ---------------------------------------------------------------------------
def _physical_vmem_bytes():
    try:
        fn = getattr(pltpu, "get_tpu_info", None)
        if fn is not None:
            cap = getattr(fn(), "vmem_capacity_bytes", None)
            if cap:
                return int(cap)
    except Exception:
        pass
    return 64 << 20        # v7x physical size: a safe lower bound everywhere


def _vmem_limit_bytes():
    # ~55% of physical VMEM: ~70 MiB on v5e/v6e (128 MiB), ~35 MiB on v7x (64 MiB).
    return max(24 << 20, min(int(_physical_vmem_bytes() * 0.55), 96 << 20))


def _default_gh_cap():
    # v5e's MXU peak (~197 TF/s) cannot hide the block-diagonal layer-2 work
    # at GH=256 even at bf16 rate -> cap GH at 128 there, 256 elsewhere.
    try:
        kind = jax.devices()[0].device_kind.lower()
        if "v5 lite" in kind or "v5e" in kind or "v5lite" in kind:
            return 128
    except Exception:
        pass
    return 256


def _sublane(itemsize):
    # sublane packing: 8 rows for f32, 16 for bf16, 32 for int8/fp8
    return max(8, 32 // max(1, int(itemsize)))


def _choose_tile_rows(num_rows, nl, gh, itemsize, weight_bytes, vmem_limit):
    sub = _sublane(itemsize)
    if num_rows <= sub:
        return int(num_rows)                 # full-dim block: always legal
    # double-buffered in/out tiles + f32 temporaries (es/t/reci/out at NL,
    # ssum/h1/h2 at GH) per tile row.
    per_row = 4 * nl * itemsize + 4 * (4 * nl + 3 * gh)
    budget = max(vmem_limit - 2 * weight_bytes - (4 << 20), per_row * sub)
    cap = max(sub, budget // per_row)
    # >= 8 grid steps (>= 4 per v7x TensorCore) once there is enough work,
    # with a ~256-row floor so the ~0.35 us per-step overhead stays amortized.
    target = max(256, -(-num_rows // 8))
    tr = min(cap, target, 2048, num_rows)
    tr = max(sub, (tr // sub) * sub)
    return int(tr)


def _align_tile_rows(tile_rows, num_rows, itemsize):
    sub = _sublane(itemsize)
    tr = max(1, min(int(tile_rows), num_rows))
    if tr == num_rows:
        return int(tr)                       # full-dim block is always legal
    tr = (tr // sub) * sub
    if tr == 0:
        tr = num_rows if num_rows < sub else sub
    return int(tr)


# ---------------------------------------------------------------------------
# Fused-weight construction (hoist this out of the hot path; once per params)
# ---------------------------------------------------------------------------
def precompute_softmax_approx(params, n, *, mlp_dtype=jnp.bfloat16,
                              gh_cap=None, fold=None):
    """Build the fold/fused weight matrices once for a given last-dim size n.

    params: pre-transposed (in, out) MLP weights, see init_reciprocal_params.
    mlp_dtype: bf16 (default, single-pass MXU) or f32 (exact parity path).
    """
    f32 = jnp.float32
    w1 = jnp.asarray(params["w1"], f32)               # (1, H)
    b1 = jnp.asarray(params["b1"], f32)               # (1, H)
    w2 = jnp.asarray(params["w2"], f32)               # (H, H)
    b2 = jnp.asarray(params["b2"], f32)               # (1, H)
    w3 = jnp.asarray(params["w3"], f32)               # (H, 1)
    b3 = jnp.asarray(params["b3"], f32).reshape(1, 1)
    h = w1.shape[1]

    if gh_cap is None:
        gh_cap = _default_gh_cap()
    if fold is None:
        if n < 128 and 128 % n == 0:
            fold = min(128 // n, max(1, gh_cap // h))
            fold = 1 << max(0, fold.bit_length() - 1)  # power of two
        else:
            fold = 1                                   # N >= 128 or awkward N
    fold = max(1, int(fold))

    wdt = jnp.dtype(mlp_dtype)
    eye = jnp.eye(fold, dtype=f32)
    # 0/1 segmented-sum + broadcast matrix (exact in bf16):
    s1 = jnp.kron(eye, jnp.ones((n, h), f32)).astype(wdt)          # (NL, GH)
    a2 = jnp.kron(eye, w2).astype(wdt)                              # (GH, GH)
    a3 = jnp.kron(eye, w3 * jnp.ones((1, n), f32)).astype(wdt)     # (GH, NL)
    w1r = jnp.tile(w1, (1, fold))                                   # (1, GH) f32
    b1r = jnp.tile(b1, (1, fold))                                   # (1, GH) f32
    b2r = jnp.tile(b2, (1, fold))                                   # (1, GH) f32
    return {"s1": s1, "w1": w1r, "b1": b1r, "a2": a2, "b2": b2r,
            "a3": a3, "b3": b3}


# ---------------------------------------------------------------------------
# Wrapper
# ---------------------------------------------------------------------------
@functools.partial(jax.jit, static_argnames=("tile_rows",))
def softmax_approx(x, fused, tile_rows=None):
    """x: (..., N) float array; fused: output of precompute_softmax_approx."""
    orig_shape = x.shape
    n = orig_shape[-1]
    r = math.prod(orig_shape[:-1]) if len(orig_shape) > 1 else 1

    nl, gh = fused["s1"].shape
    f = nl // n
    if f * n != nl:
        raise ValueError("fused weights were built for a different last-dim")

    x2 = x.reshape(r, n)
    rem = r % f
    if rem:
        # Tiny pad to an F-row multiple only (the padded rows are sliced off);
        # the full-tensor tile pad of v2 is gone — the grid's last row block
        # is allowed to be partial instead.
        x2 = jnp.pad(x2, ((0, f - rem), (0, 0)))
    rg = x2.shape[0] // f
    xk = x2.reshape(rg, nl)                     # row-major fold: no data copy

    itemsize = jnp.dtype(x.dtype).itemsize
    weight_bytes = sum(int(v.size) * jnp.dtype(v.dtype).itemsize
                       for v in fused.values())
    vmem_limit = _vmem_limit_bytes()
    if tile_rows is None:
        tr = _choose_tile_rows(rg, nl, gh, itemsize, weight_bytes, vmem_limit)
    else:
        tr = _align_tile_rows(tile_rows, rg, itemsize)
    grid = -(-rg // tr)                         # partial last block allowed

    const = lambda i: (0, 0)
    out = pl.pallas_call(
        _softmax_approx_kernel,
        out_shape=jax.ShapeDtypeStruct((rg, nl), x.dtype),
        grid_spec=pltpu.PrefetchScalarGridSpec(
            num_scalar_prefetch=0,
            grid=(grid,),
            in_specs=[
                pl.BlockSpec((tr, nl), lambda i: (i, 0)),            # x rows
                pl.BlockSpec((nl, gh), const),                       # s1
                pl.BlockSpec((1, gh), const),                        # w1 (f32)
                pl.BlockSpec((1, gh), const),                        # b1 (f32)
                pl.BlockSpec((gh, gh), const),                       # a2
                pl.BlockSpec((1, gh), const),                        # b2 (f32)
                pl.BlockSpec((gh, nl), const),                       # a3
                pl.BlockSpec(memory_space=pltpu.MemorySpace.SMEM),   # b3 scalar
            ],
            out_specs=pl.BlockSpec((tr, nl), lambda i: (i, 0)),
        ),
        compiler_params=pltpu.CompilerParams(
            dimension_semantics=("parallel",),
            vmem_limit_bytes=vmem_limit),
    )(xk, fused["s1"], fused["w1"], fused["b1"], fused["a2"], fused["b2"],
      fused["a3"], fused["b3"])

    out = out.reshape(rg * f, n)
    if rem:
        out = out[:r]
    return out.reshape(orig_shape)


# ---------------------------------------------------------------------------
# Parameters & pure-JAX reference
# ---------------------------------------------------------------------------
def init_reciprocal_params(key, hidden_size=32, dtype=jnp.float32):
    """Deterministic synthetic weights for ReciprocalApproximation.

    PyTorch shapes: layer1.weight (H,1), layer2.weight (H,H), layer3.weight (1,H).
    Stored here pre-transposed as (in, out) for y = x @ W + b.
    """
    k1, k2, k3, k4, k5, k6 = jax.random.split(key, 6)
    h = hidden_size
    scale = 0.1
    return {
        "w1": (scale * jax.random.normal(k1, (1, h))).astype(dtype),
        "b1": (scale * jax.random.normal(k2, (1, h))).astype(dtype),
        "w2": (scale * jax.random.normal(k3, (h, h))).astype(dtype),
        "b2": (scale * jax.random.normal(k4, (1, h))).astype(dtype),
        "w3": (scale * jax.random.normal(k5, (h, 1))).astype(dtype),
        "b3": (scale * jax.random.normal(k6, (1, 1))).astype(dtype),
    }


def softmax_approx_ref(x, params):
    """Pure-JAX reference matching the PyTorch forward exactly."""
    t = x / 2 + 1
    exp_score = jax.nn.relu(t * t * t)
    exp_sum = jnp.sum(exp_score, axis=-1, keepdims=True)[..., None]  # (...,1,1)
    h = jax.nn.relu(exp_sum @ params["w1"] + params["b1"])
    h = jax.nn.relu(h @ params["w2"] + params["b2"])
    reci = (h @ params["w3"] + params["b3"])[..., 0]                 # (...,1)
    return exp_score * reci


# ---------------------------------------------------------------------------
# Demo / correctness check
# ---------------------------------------------------------------------------
if __name__ == "__main__":
    key = jax.random.PRNGKey(0)
    kx, kp = jax.random.split(key)

    # Small shapes: batch=2, heads=4, seq=16, softmax over the last dim of 16.
    x = jax.random.normal(kx, (2, 4, 16, 16), dtype=jnp.float32)
    params = init_reciprocal_params(kp, hidden_size=32)
    ref = softmax_approx_ref(x, params)

    # 1) Exact-parity path: f32 MLP matmuls (Mosaic's accurate f32 lowering).
    fused_f32 = precompute_softmax_approx(x.shape[-1] and params, x.shape[-1],
                                          mlp_dtype=jnp.float32) \
        if False else precompute_softmax_approx(params, x.shape[-1],
                                                mlp_dtype=jnp.float32)
    out_exact = jax.block_until_ready(softmax_approx(x, fused_f32))
    assert out_exact.shape == x.shape
    err_exact = float(jnp.max(jnp.abs(out_exact - ref)))
    assert jnp.allclose(out_exact, ref, atol=2e-4, rtol=2e-4), err_exact

    # 2) Fast path (default): bf16 single-pass MXU matmuls; parity is bounded
    #    by bf16 rounding of the MLP weights/activations (~1e-2 relative).
    fused_fast = precompute_softmax_approx(params, x.shape[-1])
    out_fast = jax.block_until_ready(softmax_approx(x, fused_fast))
    assert out_fast.shape == x.shape
    err_fast = float(jnp.max(jnp.abs(out_fast - ref)))
    scale = float(jnp.max(jnp.abs(ref)))
    assert err_fast <= 0.05 * (1.0 + scale), (err_fast, scale)

    print("KERNEL_OK")
</pallas_src>

<mosaic_0001>
module attributes {stable_mosaic.version = 11 : i64} {
  func.func @_softmax_approx_kernel(%arg0: i32, %arg1: memref<16x128xf32, #tpu.memory_space<vmem>>, %arg2: memref<128x256xf32, #tpu.memory_space<vmem>>, %arg3: memref<1x256xf32, #tpu.memory_space<vmem>>, %arg4: memref<1x256xf32, #tpu.memory_space<vmem>>, %arg5: memref<256x256xf32, #tpu.memory_space<vmem>>, %arg6: memref<1x256xf32, #tpu.memory_space<vmem>>, %arg7: memref<256x128xf32, #tpu.memory_space<vmem>>, %arg8: memref<1x1xf32, #tpu.memory_space<smem>>, %arg9: memref<16x128xf32, #tpu.memory_space<vmem>>) attributes {dimension_semantics = [#tpu.dimension_semantics<parallel>], iteration_bounds = array<i64: 1>, scalar_prefetch = 0 : i64, scratch_operands = 0 : i64, tpu.core_type = #tpu.core_type<tc>, window_params = [{transform_indices = @transform_0, window_bounds = array<i64: 16, 128>}, {pipeline_mode = #tpu.pipeline_mode<synchronous>, transform_indices = @transform_1, window_bounds = array<i64: 128, 256>}, {pipeline_mode = #tpu.pipeline_mode<synchronous>, transform_indices = @transform_2, window_bounds = array<i64: 1, 256>}, {pipeline_mode = #tpu.pipeline_mode<synchronous>, transform_indices = @transform_3, window_bounds = array<i64: 1, 256>}, {pipeline_mode = #tpu.pipeline_mode<synchronous>, transform_indices = @transform_4, window_bounds = array<i64: 256, 256>}, {pipeline_mode = #tpu.pipeline_mode<synchronous>, transform_indices = @transform_5, window_bounds = array<i64: 1, 256>}, {pipeline_mode = #tpu.pipeline_mode<synchronous>, transform_indices = @transform_6, window_bounds = array<i64: 256, 128>}, {transform_indices = @transform_7, window_bounds = array<i64: 1, 1>}, {transform_indices = @transform_8, window_bounds = array<i64: 16, 128>}]} {
    %c0 = arith.constant 0 : index
    %c0_0 = arith.constant 0 : index
    %0 = vector.load %arg1[%c0, %c0_0] : memref<16x128xf32, #tpu.memory_space<vmem>>, vector<16x128xf32>
    %cst = arith.constant 5.000000e-01 : f32
    %1 = vector.broadcast %cst : f32 to vector<16x128xf32>
    %2 = arith.mulf %0, %1 : vector<16x128xf32>
    %cst_1 = arith.constant 1.000000e+00 : f32
    %3 = vector.broadcast %cst_1 : f32 to vector<16x128xf32>
    %4 = arith.addf %2, %3 : vector<16x128xf32>
    %5 = arith.mulf %4, %4 : vector<16x128xf32>
    %6 = arith.mulf %5, %4 : vector<16x128xf32>
    %cst_2 = arith.constant 0.000000e+00 : f32
    %7 = vector.broadcast %cst_2 : f32 to vector<16x128xf32>
    %8 = arith.maximumf %6, %7 : vector<16x128xf32>
    %c0_3 = arith.constant 0 : index
    %c0_4 = arith.constant 0 : index
    %9 = vector.load %arg2[%c0_3, %c0_4] : memref<128x256xf32, #tpu.memory_space<vmem>>, vector<128x256xf32>
    %cst_5 = arith.constant dense<0.000000e+00> : vector<16x256xf32>
    %10 = tpu.matmul %8, %9, %cst_5 {dimension_numbers = #tpu.dot_dimension_numbers<[1], [0], [0], [1], [0, 0, 1, 1], [], []>} : vector<16x128xf32>, vector<128x256xf32>, vector<16x256xf32> -> vector<16x256xf32>
    %c0_6 = arith.constant 0 : index
    %c0_7 = arith.constant 0 : index
    %11 = vector.load %arg3[%c0_6, %c0_7] : memref<1x256xf32, #tpu.memory_space<vmem>>, vector<1x256xf32>
    %12 = vector.broadcast %11 : vector<1x256xf32> to vector<16x256xf32>
    %13 = arith.mulf %10, %12 : vector<16x256xf32>
    %c0_8 = arith.constant 0 : index
    %c0_9 = arith.constant 0 : index
    %14 = vector.load %arg4[%c0_8, %c0_9] : memref<1x256xf32, #tpu.memory_space<vmem>>, vector<1x256xf32>
    %15 = vector.broadcast %14 : vector<1x256xf32> to vector<16x256xf32>
    %16 = arith.addf %13, %15 : vector<16x256xf32>
    %cst_10 = arith.constant 0.000000e+00 : f32
    %17 = vector.broadcast %cst_10 : f32 to vector<16x256xf32>
    %18 = arith.maximumf %16, %17 : vector<16x256xf32>
    %c0_11 = arith.constant 0 : index
    %c0_12 = arith.constant 0 : index
    %19 = vector.load %arg5[%c0_11, %c0_12] : memref<256x256xf32, #tpu.memory_space<vmem>>, vector<256x256xf32>
    %cst_13 = arith.constant dense<0.000000e+00> : vector<16x256xf32>
    %20 = tpu.matmul %18, %19, %cst_13 {dimension_numbers = #tpu.dot_dimension_numbers<[1], [0], [0], [1], [0, 0, 1, 1], [], []>} : vector<16x256xf32>, vector<256x256xf32>, vector<16x256xf32> -> vector<16x256xf32>
    %c0_14 = arith.constant 0 : index
    %c0_15 = arith.constant 0 : index
    %21 = vector.load %arg6[%c0_14, %c0_15] : memref<1x256xf32, #tpu.memory_space<vmem>>, vector<1x256xf32>
    %22 = vector.broadcast %21 : vector<1x256xf32> to vector<16x256xf32>
    %23 = arith.addf %20, %22 : vector<16x256xf32>
    %cst_16 = arith.constant 0.000000e+00 : f32
    %24 = vector.broadcast %cst_16 : f32 to vector<16x256xf32>
    %25 = arith.maximumf %23, %24 : vector<16x256xf32>
    %c0_17 = arith.constant 0 : index
    %c0_18 = arith.constant 0 : index
    %26 = vector.load %arg7[%c0_17, %c0_18] : memref<256x128xf32, #tpu.memory_space<vmem>>, vector<256x128xf32>
    %cst_19 = arith.constant dense<0.000000e+00> : vector<16x128xf32>
    %27 = tpu.matmul %25, %26, %cst_19 {dimension_numbers = #tpu.dot_dimension_numbers<[1], [0], [0], [1], [0, 0, 1, 1], [], []>} : vector<16x256xf32>, vector<256x128xf32>, vector<16x128xf32> -> vector<16x128xf32>
    %c0_20 = arith.constant 0 : index
    %c0_21 = arith.constant 0 : index
    %28 = memref.load %arg8[%c0_20, %c0_21] : memref<1x1xf32, #tpu.memory_space<smem>>
    %29 = vector.broadcast %28 : f32 to vector<16x128xf32>
    %30 = arith.addf %27, %29 : vector<16x128xf32>
    %31 = arith.mulf %8, %30 : vector<16x128xf32>
    %c0_22 = arith.constant 0 : index
    %c0_23 = arith.constant 0 : index
    %32 = vector.load %arg9[%c0_22, %c0_23] : memref<16x128xf32, #tpu.memory_space<vmem>>, vector<16x128xf32>
    tpu.vector_store %arg9[%c0_22, %c0_23], %31 {strides = array<i32>} : memref<16x128xf32, #tpu.memory_space<vmem>>, vector<16x128xf32>,
    return
  }
  func.func @transform_0(%arg0: i32) -> (i32, i32) {
    %c0_i32 = arith.constant 0 : i32
    %c0_i32_0 = arith.constant 0 : i32
    return %arg0, %c0_i32 : i32, i32
  }
  func.func @transform_1(%arg0: i32) -> (i32, i32) {
    %c0_i32 = arith.constant 0 : i32
    %c0_i32_0 = arith.constant 0 : i32
    %c0_i32_1 = arith.constant 0 : i32
    return %c0_i32, %c0_i32_0 : i32, i32
  }
  func.func @transform_2(%arg0: i32) -> (i32, i32) {
    %c0_i32 = arith.constant 0 : i32
    %c0_i32_0 = arith.constant 0 : i32
    %c0_i32_1 = arith.constant 0 : i32
    return %c0_i32, %c0_i32_0 : i32, i32
  }
  func.func @transform_3(%arg0: i32) -> (i32, i32) {
    %c0_i32 = arith.constant 0 : i32
    %c0_i32_0 = arith.constant 0 : i32
    %c0_i32_1 = arith.constant 0 : i32
    return %c0_i32, %c0_i32_0 : i32, i32
  }
  func.func @transform_4(%arg0: i32) -> (i32, i32) {
    %c0_i32 = arith.constant 0 : i32
    %c0_i32_0 = arith.constant 0 : i32
    %c0_i32_1 = arith.constant 0 : i32
    return %c0_i32, %c0_i32_0 : i32, i32
  }
  func.func @transform_5(%arg0: i32) -> (i32, i32) {
    %c0_i32 = arith.constant 0 : i32
    %c0_i32_0 = arith.constant 0 : i32
    %c0_i32_1 = arith.constant 0 : i32
    return %c0_i32, %c0_i32_0 : i32, i32
  }
  func.func @transform_6(%arg0: i32) -> (i32, i32) {
    %c0_i32 = arith.constant 0 : i32
    %c0_i32_0 = arith.constant 0 : i32
    %c0_i32_1 = arith.constant 0 : i32
    return %c0_i32, %c0_i32_0 : i32, i32
  }
  func.func @transform_7(%arg0: i32) -> (i32, i32) {
    %c0_i32 = arith.constant 0 : i32
    %c0_i32_0 = arith.constant 0 : i32
    %c0_i32_1 = arith.constant 0 : i32
    return %c0_i32, %c0_i32_0 : i32, i32
  }
  func.func @transform_8(%arg0: i32) -> (i32, i32) {
    %c0_i32 = arith.constant 0 : i32
    %c0_i32_0 = arith.constant 0 : i32
    return %arg0, %c0_i32 : i32, i32
  }
}

</mosaic_0001>

<llo_original>
// kernel: softmax_approx.1
$region0: #{softmax_approx.1}
  #allocation0 [shape = 'u32[]', space=smem, size = 0x4, offset = 0x4, fixed_abs, tag = 'smem constant byte address 0x4 - core index']
  #allocation1 [shape = 'u32[144,128]{1,0:T(1,128)}', space=vmem, size = 0x12000, scoped, tag = 'internal scratch']
  #allocation2 [shape = 'f32[1,1]{1,0:T(1,128)S(6)}', space=smem, size = 0x200, scoped, tag = 'scoped memory for softmax_approx.1']
  %s0 = inlined_call_operand.vmem [shape: f32[16,128], index: 0, kind: input, shape index: {}]
  %s1 = inlined_call_operand.hbm [shape: f32[128,256], index: 1, kind: input, shape index: {}]
  %s2 = inlined_call_operand.vmem [shape: f32[1,256], index: 2, kind: input, shape index: {}]
  %s3 = inlined_call_operand.vmem [shape: f32[1,256], index: 3, kind: input, shape index: {}]
  %s4 = inlined_call_operand.hbm [shape: f32[256,256], index: 4, kind: input, shape index: {}]
  %s5 = inlined_call_operand.vmem [shape: f32[1,256], index: 5, kind: input, shape index: {}]
  %s6 = inlined_call_operand.hbm [shape: f32[256,128], index: 6, kind: input, shape index: {}]
  %s7 = inlined_call_operand.<no memory space> [shape: f32[1,1], index: 7, kind: input, shape index: {}]
  %s8 = inlined_call_operand.vmem [shape: f32[16,128], index: 8, kind: output, shape index: {}]
  %s9 = sld [smem:[#allocation0]]
  $region54: #{softmax_approx.1} parent=0
    _
  %s11 = ssub.s32 1, %s9
  %s12 = scalar_select 0, %s11, %s9
  %13 = sst [smem:[#allocation2]] %s7
  $region1: #{softmax_approx.1} parent=0
    #allocation3 [shape = 'u8[131072]{0}', space=vmem, size = 0x20000, scoped, tag = 'input window, operand 1, single buffered']
    #allocation4 [shape = 's32[1]{0}', space=sflag, size = 0x4, scoped, tag = 'scoped memory for softmax_approx.1']
    #allocation5 [shape = 'u8[262144]{0}', space=vmem, size = 0x40000, scoped, tag = 'input window, operand 4, single buffered']
    #allocation6 [shape = 's32[1]{0}', space=sflag, size = 0x4, scoped, tag = 'scoped memory for softmax_approx.1']
    #allocation7 [shape = 'u8[131072]{0}', space=vmem, size = 0x20000, scoped, tag = 'input window, operand 6, single buffered']
    %14 = vsyncpa [#allocation4], 0
    %15 = vsyncpa [#allocation6], 0
    // Predicated region
    $region2: #{softmax_approx.1} parent=1 // pred_check
      _
    $region3: #{softmax_approx.1} parent=1 // pred_check_branch
      %17 = sbr.rel (0) target = $region5
    $region4: #{softmax_approx.1} parent=1 // pred_region
      _
    $region5: #{softmax_approx.1} parent=1 // pred_fallthru
      _
    // Predicated region
    $region6: #{softmax_approx.1} parent=1 // pred_check
      _
    $region7: #{softmax_approx.1} parent=1 // pred_check_branch
      %19 = sbr.rel (0) target = $region9
    $region8: #{softmax_approx.1} parent=1 // pred_region
      %s21 = ssub.s32 4096, 4096
      %22 = vsyncadd [#allocation4], %s21
      %s23 = sshll.u32 [#allocation3], 4
      %s24 = int_to_ptr.vmem [resolvable:$true] %s23
      %29 = dma.hbm_to_vmem [thread:$0]  %s1, 4096, %s24, [#allocation4], 256, 256, 16
    $region9: #{softmax_approx.1} parent=1 // pred_fallthru
      _
    // Predicated region
    $region10: #{softmax_approx.1} parent=1 // pred_check
      _
    $region11: #{softmax_approx.1} parent=1 // pred_check_branch
      %31 = sbr.rel (0) target = $region13
    $region12: #{softmax_approx.1} parent=1 // pred_region
      _
    $region13: #{softmax_approx.1} parent=1 // pred_fallthru
      _
    // Predicated region
    $region14: #{softmax_approx.1} parent=1 // pred_check
      _
    $region15: #{softmax_approx.1} parent=1 // pred_check_branch
      %33 = sbr.rel (0) target = $region17
    $region16: #{softmax_approx.1} parent=1 // pred_region
      _
    $region17: #{softmax_approx.1} parent=1 // pred_fallthru
      _
    // Predicated region
    $region18: #{softmax_approx.1} parent=1 // pred_check
      _
    $region19: #{softmax_approx.1} parent=1 // pred_check_branch
      %35 = sbr.rel (0) target = $region21
    $region20: #{softmax_approx.1} parent=1 // pred_region
      %s37 = ssub.s32 8192, 8192
      %38 = vsyncadd [#allocation6], %s37
      %s39 = sshll.u32 [#allocation5], 4
      %s40 = int_to_ptr.vmem [resolvable:$true] %s39
      %45 = dma.hbm_to_vmem [thread:$0]  %s4, 8192, %s40, [#allocation6], 256, 256, 16
    $region21: #{softmax_approx.1} parent=1 // pred_fallthru
      _
    // Predicated region
    $region22: #{softmax_approx.1} parent=1 // pred_check
      _
    $region23: #{softmax_approx.1} parent=1 // pred_check_branch
      %47 = sbr.rel (0) target = $region25
    $region24: #{softmax_approx.1} parent=1 // pred_region
      _
    $region25: #{softmax_approx.1} parent=1 // pred_fallthru
      _
    // Predicated region
    $region26: #{softmax_approx.1} parent=1 // pred_check
      _
    $region27: #{softmax_approx.1} parent=1 // pred_check_branch
      %49 = sbr.rel (0) target = $region29
    $region28: #{softmax_approx.1} parent=1 // pred_region
      %s51 = ssub.s32 4096, 4096
      %52 = vsyncadd [#allocation6], %s51
      %s53 = sshll.u32 [#allocation7], 4
      %s54 = int_to_ptr.vmem [resolvable:$true] %s53
      %59 = dma.hbm_to_vmem [thread:$0]  %s6, 4096, %s54, [#allocation6], 128, 128, 8
    $region29: #{softmax_approx.1} parent=1 // pred_fallthru
      _
    // Predicated region
    $region30: #{softmax_approx.1} parent=1 // pred_check
      _
    $region31: #{softmax_approx.1} parent=1 // pred_check_branch
      %61 = sbr.rel (0) target = $region33
    $region32: #{softmax_approx.1} parent=1 // pred_region
      _
    $region33: #{softmax_approx.1} parent=1 // pred_fallthru
      _
    // Predicated region
    $region34: #{softmax_approx.1} parent=1 // pred_check
      _
    $region35: #{softmax_approx.1} parent=1 // pred_check_branch
      %63 = sbr.rel (0) target = $region37
    $region36: #{softmax_approx.1} parent=1 // pred_region
      %64 = dma.done [#allocation4], 4096
    $region37: #{softmax_approx.1} parent=1 // pred_fallthru
      _
    // Predicated region
    $region38: #{softmax_approx.1} parent=1 // pred_check
      _
    $region39: #{softmax_approx.1} parent=1 // pred_check_branch
      %66 = sbr.rel (0) target = $region41
    $region40: #{softmax_approx.1} parent=1 // pred_region
      %67 = dma.done [#allocation6], 8192
    $region41: #{softmax_approx.1} parent=1 // pred_fallthru
      _
    // Predicated region
    $region42: #{softmax_approx.1} parent=1 // pred_check
      _
    $region43: #{softmax_approx.1} parent=1 // pred_check_branch
      %69 = sbr.rel (0) target = $region45
    $region44: #{softmax_approx.1} parent=1 // pred_region
      %70 = dma.done [#allocation6], 4096
    $region45: #{softmax_approx.1} parent=1 // pred_fallthru
      _
    %v71 = vld [vmem:[%s0] sm:$0xff]
    %v72 = vld [vmem:[%s0 + $0x8] sm:$0xff]
    %v73 = vmul.f32 %v71, 0.5
    %v74 = vmul.f32 %v72, 0.5
    %v75 = vadd.f32 %v73, 1.0
    %v76 = vadd.f32 %v74, 1.0
    %v77 = vmul.f32 %v75, %v75
    %v78 = vmul.f32 %v76, %v76
    %v79 = vmul.f32 %v77, %v75
    %v80 = vmul.f32 %v78, %v76
    %v81 = vmax.f32 %v79, 0.0
    %v82 = vmax.f32 %v80, 0.0
    %v83 = vld [vmem:[#allocation3] sm:$0xff]
    %v84 = vld [vmem:[#allocation3 + $0x8] sm:$0xff]
    %v85 = vld [vmem:[#allocation3 + $0x10] sm:$0xff]
    %v86 = vld [vmem:[#allocation3 + $0x18] sm:$0xff]
    %v87 = vld [vmem:[#allocation3 + $0x20] sm:$0xff]
    %v88 = vld [vmem:[#allocation3 + $0x28] sm:$0xff]
    %v89 = vld [vmem:[#allocation3 + $0x30] sm:$0xff]
    %v90 = vld [vmem:[#allocation3 + $0x38] sm:$0xff]
    %v91 = vld [vmem:[#allocation3 + $0x40] sm:$0xff]
    %v92 = vld [vmem:[#allocation3 + $0x48] sm:$0xff]
    %v93 = vld [vmem:[#allocation3 + $0x50] sm:$0xff]
    %v94 = vld [vmem:[#allocation3 + $0x58] sm:$0xff]
    %v95 = vld [vmem:[#allocation3 + $0x60] sm:$0xff]
    %v96 = vld [vmem:[#allocation3 + $0x68] sm:$0xff]
    %v97 = vld [vmem:[#allocation3 + $0x70] sm:$0xff]
    %v98 = vld [vmem:[#allocation3 + $0x78] sm:$0xff]
    %v99 = vld [vmem:[#allocation3 + $0x80] sm:$0xff]
    %v100 = vld [vmem:[#allocation3 + $0x88] sm:$0xff]
    %v101 = vld [vmem:[#allocation3 + $0x90] sm:$0xff]
    %v102 = vld [vmem:[#allocation3 + $0x98] sm:$0xff]
    %v103 = vld [vmem:[#allocation3 + $0xa0] sm:$0xff]
    %v104 = vld [vmem:[#allocation3 + $0xa8] sm:$0xff]
    %v105 = vld [vmem:[#allocation3 + $0xb0] sm:$0xff]
    %v106 = vld [vmem:[#allocation3 + $0xb8] sm:$0xff]
    %v107 = vld [vmem:[#allocation3 + $0xc0] sm:$0xff]
    %v108 = vld [vmem:[#allocation3 + $0xc8] sm:$0xff]
    %v109 = vld [vmem:[#allocation3 + $0xd0] sm:$0xff]
    %v110 = vld [vmem:[#allocation3 + $0xd8] sm:$0xff]
    %v111 = vld [vmem:[#allocation3 + $0xe0] sm:$0xff]
    %v112 = vld [vmem:[#allocation3 + $0xe8] sm:$0xff]
    %v113 = vld [vmem:[#allocation3 + $0xf0] sm:$0xff]
    %v114 = vld [vmem:[#allocation3 + $0xf8] sm:$0xff]
    %115 = vmatprep.subr.mxu0 %v84
    %116 = vmatpush1.msra.mxu0 %v83
    %117 = vmatprep.subr.mxu0 %v86
    %118 = vmatpush1.msra.mxu0 %v85
    %119 = vmatprep.subr.mxu0 %v88
    %120 = vmatpush1.msra.mxu0 %v87
    %121 = vmatprep.subr.mxu0 %v90
    %122 = vmatpush1.msra.mxu0 %v89
    %123 = vmatprep.subr.mxu0 %v92
    %124 = vmatpush1.msra.mxu0 %v91
    %125 = vmatprep.subr.mxu0 %v94
    %126 = vmatpush1.msra.mxu0 %v93
    %127 = vmatprep.subr.mxu0 %v96
    %128 = vmatpush1.msra.mxu0 %v95
    %129 = vmatprep.subr.mxu0 %v98
    %130 = vmatpush1.msra.mxu0 %v97
    %131 = vmatprep.subr.mxu0 %v100
    %132 = vmatpush1.msra.mxu0 %v99
    %133 = vmatprep.subr.mxu0 %v102
    %134 = vmatpush1.msra.mxu0 %v101
    %135 = vmatprep.subr.mxu0 %v104
    %136 = vmatpush1.msra.mxu0 %v103
    %137 = vmatprep.subr.mxu0 %v106
    %138 = vmatpush1.msra.mxu0 %v105
    %139 = vmatprep.subr.mxu0 %v108
    %140 = vmatpush1.msra.mxu0 %v107
    %141 = vmatprep.subr.mxu0 %v110
    %142 = vmatpush1.msra.mxu0 %v109
    %143 = vmatprep.subr.mxu0 %v112
    %144 = vmatpush1.msra.mxu0 %v111
    %145 = vmatprep.subr.mxu0 %v114
    %146 = vmatpush1.msra.mxu0 %v113
    %147 = vmatprep.subr.mxu0 0.0
    %148 = vmatpush1.msra.mxu0 0.0
    %149 = vmatprep.subr.mxu0 0.0
    %150 = vmatpush1.msra.mxu0 0.0
    %151 = vmatprep.subr.mxu0 0.0
    %152 = vmatpush1.msra.mxu0 0.0
    %153 = vmatprep.subr.mxu0 0.0
    %154 = vmatpush1.msra.mxu0 0.0
    %155 = vmatprep.subr.mxu0 0.0
    %156 = vmatpush1.msra.mxu0 0.0
    %157 = vmatprep.subr.mxu0 0.0
    %158 = vmatpush1.msra.mxu0 0.0
    %159 = vmatprep.subr.mxu0 0.0
    %160 = vmatpush1.msra.mxu0 0.0
    %161 = vmatprep.subr.mxu0 0.0
    %162 = vmatpush1.msra.mxu0 0.0
    %163 = vmatprep.subr.mxu0 0.0
    %164 = vmatpush1.msra.mxu0 0.0
    %165 = vmatprep.subr.mxu0 0.0
    %166 = vmatpush1.msra.mxu0 0.0
    %167 = vmatprep.subr.mxu0 0.0
    %168 = vmatpush1.msra.mxu0 0.0
    %169 = vmatprep.subr.mxu0 0.0
    %170 = vmatpush1.msra.mxu0 0.0
    %171 = vmatprep.subr.mxu0 0.0
    %172 = vmatpush1.msra.mxu0 0.0
    %173 = vmatprep.subr.mxu0 0.0
    %174 = vmatpush1.msra.mxu0 0.0
    %175 = vmatprep.subr.mxu0 0.0
    %176 = vmatpush1.msra.mxu0 0.0
    %177 = vmatprep.subr.mxu0 0.0
    %178 = vmatpush1.msra.mxu0 0.0
    %179 = vmatprep.mubr.f32.mxu0 0.0
    %180 = vmatmul.mubr.f32.gmra.mrb[0].mxu0 %v81
    %v181 = vpop.f32.mrb[0].mxu0
    %v182 = vadd.f32 0.0, %v181
    %v183 = vpop.f32.mrb[0].mxu0
    %v184 = vadd.f32 0.0, %v183
    %185 = vmatprep.mubr.f32.mxu0 0.0
    %186 = vmatmul.mubr.f32.gmra.mrb[0].mxu0 %v82
    %v187 = vpop.f32.mrb[0].mxu0
    %v188 = vadd.f32 0.0, %v187
    %v189 = vpop.f32.mrb[0].mxu0
    %v190 = vadd.f32 0.0, %v189
    %191 = vdwg.mxu0
    %v192 = vld [vmem:[%s2] sm:$0x3]
    %v194 = vlaneseq
    %v195 = vshrl.u32 %v194, 7
    %v196 = vsub.s32 0, %v195
    %v197 = vrot.slane %v192, %v196
    %v198 = vlaneseq
    %v199 = vshrl.u32 %v198, 7
    %v200 = vsub.s32 1, %v199
    %v201 = vrot.slane %v192, %v200
    %v204 = vmul.f32 %v182, %v197
    %v205 = vmul.f32 %v184, %v201
    %v206 = vmul.f32 %v188, %v197
    %v207 = vmul.f32 %v190, %v201
    %v208 = vld [vmem:[%s3] sm:$0x3]
    %v210 = vlaneseq
    %v211 = vshrl.u32 %v210, 7
    %v212 = vsub.s32 0, %v211
    %v213 = vrot.slane %v208, %v212
    %v214 = vlaneseq
    %v215 = vshrl.u32 %v214, 7
    %v216 = vsub.s32 1, %v215
    %v217 = vrot.slane %v208, %v216
    %v220 = vadd.f32 %v204, %v213
    %v221 = vadd.f32 %v205, %v217
    %v222 = vadd.f32 %v206, %v213
    %v223 = vadd.f32 %v207, %v217
    %v224 = vmax.f32 %v220, 0.0
    %v225 = vmax.f32 %v221, 0.0
    %v226 = vmax.f32 %v222, 0.0
    %v227 = vmax.f32 %v223, 0.0
    %v228 = vld [vmem:[#allocation5] sm:$0xff]
    %v229 = vld [vmem:[#allocation5 + $0x8] sm:$0xff]
    %v230 = vld [vmem:[#allocation5 + $0x10] sm:$0xff]
    %v231 = vld [vmem:[#allocation5 + $0x18] sm:$0xff]
    %v232 = vld [vmem:[#allocation5 + $0x20] sm:$0xff]
    %v233 = vld [vmem:[#allocation5 + $0x28] sm:$0xff]
    %v234 = vld [vmem:[#allocation5 + $0x30] sm:$0xff]
    %v235 = vld [vmem:[#allocation5 + $0x38] sm:$0xff]
    %v236 = vld [vmem:[#allocation5 + $0x40] sm:$0xff]
    %v237 = vld [vmem:[#allocation5 + $0x48] sm:$0xff]
    %v238 = vld [vmem:[#allocation5 + $0x50] sm:$0xff]
    %v239 = vld [vmem:[#allocation5 + $0x58] sm:$0xff]
    %v240 = vld [vmem:[#allocation5 + $0x60] sm:$0xff]
    %v241 = vld [vmem:[#allocation5 + $0x68] sm:$0xff]
    %v242 = vld [vmem:[#allocation5 + $0x70] sm:$0xff]
    %v243 = vld [vmem:[#allocation5 + $0x78] sm:$0xff]
    %v244 = vld [vmem:[#allocation5 + $0x80] sm:$0xff]
    %v245 = vld [vmem:[#allocation5 + $0x88] sm:$0xff]
    %v246 = vld [vmem:[#allocation5 + $0x90] sm:$0xff]
    %v247 = vld [vmem:[#allocation5 + $0x98] sm:$0xff]
    %v248 = vld [vmem:[#allocation5 + $0xa0] sm:$0xff]
    %v249 = vld [vmem:[#allocation5 + $0xa8] sm:$0xff]
    %v250 = vld [vmem:[#allocation5 + $0xb0] sm:$0xff]
    %v251 = vld [vmem:[#allocation5 + $0xb8] sm:$0xff]
    %v252 = vld [vmem:[#allocation5 + $0xc0] sm:$0xff]
    %v253 = vld [vmem:[#allocation5 + $0xc8] sm:$0xff]
    %v254 = vld [vmem:[#allocation5 + $0xd0] sm:$0xff]
    %v255 = vld [vmem:[#allocation5 + $0xd8] sm:$0xff]
    %v256 = vld [vmem:[#allocation5 + $0xe0] sm:$0xff]
    %v257 = vld [vmem:[#allocation5 + $0xe8] sm:$0xff]
    %v258 = vld [vmem:[#allocation5 + $0xf0] sm:$0xff]
    %v259 = vld [vmem:[#allocation5 + $0xf8] sm:$0xff]
    %v260 = vld [vmem:[#allocation5 + $0x100] sm:$0xff]
    %v261 = vld [vmem:[#allocation5 + $0x108] sm:$0xff]
    %v262 = vld [vmem:[#allocation5 + $0x110] sm:$0xff]
    %v263 = vld [vmem:[#allocation5 + $0x118] sm:$0xff]
    %v264 = vld [vmem:[#allocation5 + $0x120] sm:$0xff]
    %v265 = vld [vmem:[#allocation5 + $0x128] sm:$0xff]
    %v266 = vld [vmem:[#allocation5 + $0x130] sm:$0xff]
    %v267 = vld [vmem:[#allocation5 + $0x138] sm:$0xff]
    %v268 = vld [vmem:[#allocation5 + $0x140] sm:$0xff]
    %v269 = vld [vmem:[#allocation5 + $0x148] sm:$0xff]
    %v270 = vld [vmem:[#allocation5 + $0x150] sm:$0xff]
    %v271 = vld [vmem:[#allocation5 + $0x158] sm:$0xff]
    %v272 = vld [vmem:[#allocation5 + $0x160] sm:$0xff]
    %v273 = vld [vmem:[#allocation5 + $0x168] sm:$0xff]
    %v274 = vld [vmem:[#allocation5 + $0x170] sm:$0xff]
    %v275 = vld [vmem:[#allocation5 + $0x178] sm:$0xff]
    %v276 = vld [vmem:[#allocation5 + $0x180] sm:$0xff]
    %v277 = vld [vmem:[#allocation5 + $0x188] sm:$0xff]
    %v278 = vld [vmem:[#allocation5 + $0x190] sm:$0xff]
    %v279 = vld [vmem:[#allocation5 + $0x198] sm:$0xff]
    %v280 = vld [vmem:[#allocation5 + $0x1a0] sm:$0xff]
    %v281 = vld [vmem:[#allocation5 + $0x1a8] sm:$0xff]
    %v282 = vld [vmem:[#allocation5 + $0x1b0] sm:$0xff]
    %v283 = vld [vmem:[#allocation5 + $0x1b8] sm:$0xff]
    %v284 = vld [vmem:[#allocation5 + $0x1c0] sm:$0xff]
    %v285 = vld [vmem:[#allocation5 + $0x1c8] sm:$0xff]
    %v286 = vld [vmem:[#allocation5 + $0x1d0] sm:$0xff]
    %v287 = vld [vmem:[#allocation5 + $0x1d8] sm:$0xff]
    %v288 = vld [vmem:[#allocation5 + $0x1e0] sm:$0xff]
    %v289 = vld [vmem:[#allocation5 + $0x1e8] sm:$0xff]
    %v290 = vld [vmem:[#allocation5 + $0x1f0] sm:$0xff]
    %v291 = vld [vmem:[#allocation5 + $0x1f8] sm:$0xff]
    %v292 = vld [vmem:[%s5] sm:$0x3]
    %v294 = vlaneseq
    %v295 = vshrl.u32 %v294, 7
    %v296 = vsub.s32 0, %v295
    %v297 = vrot.slane %v292, %v296
    %v298 = vlaneseq
    %v299 = vshrl.u32 %v298, 7
    %v300 = vsub.s32 1, %v299
    %v301 = vrot.slane %v292, %v300
    %304 = vmatprep.subr.mxu0 %v229
    %305 = vmatpush1.msra.mxu0 %v228
    %306 = vmatprep.subr.mxu0 %v231
    %307 = vmatpush1.msra.mxu0 %v230
    %308 = vmatprep.subr.mxu0 %v233
    %309 = vmatpush1.msra.mxu0 %v232
    %310 = vmatprep.subr.mxu0 %v235
    %311 = vmatpush1.msra.mxu0 %v234
    %312 = vmatprep.subr.mxu0 %v237
    %313 = vmatpush1.msra.mxu0 %v236
    %314 = vmatprep.subr.mxu0 %v239
    %315 = vmatpush1.msra.mxu0 %v238
    %316 = vmatprep.subr.mxu0 %v241
    %317 = vmatpush1.msra.mxu0 %v240
    %318 = vmatprep.subr.mxu0 %v243
    %319 = vmatpush1.msra.mxu0 %v242
    %320 = vmatprep.subr.mxu0 %v245
    %321 = vmatpush1.msra.mxu0 %v244
    %322 = vmatprep.subr.mxu0 %v247
    %323 = vmatpush1.msra.mxu0 %v246
    %324 = vmatprep.subr.mxu0 %v249
    %325 = vmatpush1.msra.mxu0 %v248
    %326 = vmatprep.subr.mxu0 %v251
    %327 = vmatpush1.msra.mxu0 %v250
    %328 = vmatprep.subr.mxu0 %v253
    %329 = vmatpush1.msra.mxu0 %v252
    %330 = vmatprep.subr.mxu0 %v255
    %331 = vmatpush1.msra.mxu0 %v254
    %332 = vmatprep.subr.mxu0 %v257
    %333 = vmatpush1.msra.mxu0 %v256
    %334 = vmatprep.subr.mxu0 %v259
    %335 = vmatpush1.msra.mxu0 %v258
    %336 = vmatprep.subr.mxu0 %v261
    %337 = vmatpush1.msra.mxu0 %v260
    %338 = vmatprep.subr.mxu0 %v263
    %339 = vmatpush1.msra.mxu0 %v262
    %340 = vmatprep.subr.mxu0 %v265
    %341 = vmatpush1.msra.mxu0 %v264
    %342 = vmatprep.subr.mxu0 %v267
    %343 = vmatpush1.msra.mxu0 %v266
    %344 = vmatprep.subr.mxu0 %v269
    %345 = vmatpush1.msra.mxu0 %v268
    %346 = vmatprep.subr.mxu0 %v271
    %347 = vmatpush1.msra.mxu0 %v270
    %348 = vmatprep.subr.mxu0 %v273
    %349 = vmatpush1.msra.mxu0 %v272
    %350 = vmatprep.subr.mxu0 %v275
    %351 = vmatpush1.msra.mxu0 %v274
    %352 = vmatprep.subr.mxu0 %v277
    %353 = vmatpush1.msra.mxu0 %v276
    %354 = vmatprep.subr.mxu0 %v279
    %355 = vmatpush1.msra.mxu0 %v278
    %356 = vmatprep.subr.mxu0 %v281
    %357 = vmatpush1.msra.mxu0 %v280
    %358 = vmatprep.subr.mxu0 %v283
    %359 = vmatpush1.msra.mxu0 %v282
    %360 = vmatprep.subr.mxu0 %v285
    %361 = vmatpush1.msra.mxu0 %v284
    %362 = vmatprep.subr.mxu0 %v287
    %363 = vmatpush1.msra.mxu0 %v286
    %364 = vmatprep.subr.mxu0 %v289
    %365 = vmatpush1.msra.mxu0 %v288
    %366 = vmatprep.subr.mxu0 %v291
    %367 = vmatpush1.msra.mxu0 %v290
    %368 = vmatprep.mubr.f32.mxu0 %v225
    %369 = vmatmul.mubr.f32.gmra.mrb[0].mxu0 %v224
    %v370 = vpop.f32.mrb[0].mxu0
    %v371 = vadd.f32 %v297, %v370
    %v372 = vpop.f32.mrb[0].mxu0
    %v373 = vadd.f32 %v301, %v372
    %374 = vmatprep.mubr.f32.mxu0 %v227
    %375 = vmatmul.mubr.f32.gmra.mrb[0].mxu0 %v226
    %v376 = vpop.f32.mrb[0].mxu0
    %v377 = vadd.f32 %v297, %v376
    %v378 = vpop.f32.mrb[0].mxu0
    %v379 = vadd.f32 %v301, %v378
    %380 = vdwg.mxu0
    %v381 = vmax.f32 %v371, 0.0
    %v382 = vmax.f32 %v373, 0.0
    %v383 = vmax.f32 %v377, 0.0
    %v384 = vmax.f32 %v379, 0.0
    %v385 = vld [vmem:[#allocation7] sm:$0xff]
    %v386 = vld [vmem:[#allocation7 + $0x8] sm:$0xff]
    %v387 = vld [vmem:[#allocation7 + $0x10] sm:$0xff]
    %v388 = vld [vmem:[#allocation7 + $0x18] sm:$0xff]
    %v389 = vld [vmem:[#allocation7 + $0x20] sm:$0xff]
    %v390 = vld [vmem:[#allocation7 + $0x28] sm:$0xff]
    %v391 = vld [vmem:[#allocation7 + $0x30] sm:$0xff]
    %v392 = vld [vmem:[#allocation7 + $0x38] sm:$0xff]
    %v393 = vld [vmem:[#allocation7 + $0x40] sm:$0xff]
    %v394 = vld [vmem:[#allocation7 + $0x48] sm:$0xff]
    %v395 = vld [vmem:[#allocation7 + $0x50] sm:$0xff]
    %v396 = vld [vmem:[#allocation7 + $0x58] sm:$0xff]
    %v397 = vld [vmem:[#allocation7 + $0x60] sm:$0xff]
    %v398 = vld [vmem:[#allocation7 + $0x68] sm:$0xff]
    %v399 = vld [vmem:[#allocation7 + $0x70] sm:$0xff]
    %v400 = vld [vmem:[#allocation7 + $0x78] sm:$0xff]
    %v401 = vld [vmem:[#allocation7 + $0x80] sm:$0xff]
    %v402 = vld [vmem:[#allocation7 + $0x88] sm:$0xff]
    %v403 = vld [vmem:[#allocation7 + $0x90] sm:$0xff]
    %v404 = vld [vmem:[#allocation7 + $0x98] sm:$0xff]
    %v405 = vld [vmem:[#allocation7 + $0xa0] sm:$0xff]
    %v406 = vld [vmem:[#allocation7 + $0xa8] sm:$0xff]
    %v407 = vld [vmem:[#allocation7 + $0xb0] sm:$0xff]
    %v408 = vld [vmem:[#allocation7 + $0xb8] sm:$0xff]
    %v409 = vld [vmem:[#allocation7 + $0xc0] sm:$0xff]
    %v410 = vld [vmem:[#allocation7 + $0xc8] sm:$0xff]
    %v411 = vld [vmem:[#allocation7 + $0xd0] sm:$0xff]
    %v412 = vld [vmem:[#allocation7 + $0xd8] sm:$0xff]
    %v413 = vld [vmem:[#allocation7 + $0xe0] sm:$0xff]
    %v414 = vld [vmem:[#allocation7 + $0xe8] sm:$0xff]
    %v415 = vld [vmem:[#allocation7 + $0xf0] sm:$0xff]
    %v416 = vld [vmem:[#allocation7 + $0xf8] sm:$0xff]
    %s417 = sld [smem:[#allocation2]]
    %v418 = vstv %s417
    %419 = vmatprep.subr.mxu0 0.0
    %420 = vmatpush1.msra.mxu0 %v385
    %421 = vmatprep.subr.mxu0 0.0
    %422 = vmatpush1.msra.mxu0 %v386
    %423 = vmatprep.subr.mxu0 0.0
    %424 = vmatpush1.msra.mxu0 %v387
    %425 = vmatprep.subr.mxu0 0.0
    %426 = vmatpush1.msra.mxu0 %v388
    %427 = vmatprep.subr.mxu0 0.0
    %428 = vmatpush1.msra.mxu0 %v389
    %429 = vmatprep.subr.mxu0 0.0
    %430 = vmatpush1.msra.mxu0 %v390
    %431 = vmatprep.subr.mxu0 0.0
    %432 = vmatpush1.msra.mxu0 %v391
    %433 = vmatprep.subr.mxu0 0.0
    %434 = vmatpush1.msra.mxu0 %v392
    %435 = vmatprep.subr.mxu0 0.0
    %436 = vmatpush1.msra.mxu0 %v393
    %437 = vmatprep.subr.mxu0 0.0
    %438 = vmatpush1.msra.mxu0 %v394
    %439 = vmatprep.subr.mxu0 0.0
    %440 = vmatpush1.msra.mxu0 %v395
    %441 = vmatprep.subr.mxu0 0.0
    %442 = vmatpush1.msra.mxu0 %v396
    %443 = vmatprep.subr.mxu0 0.0
    %444 = vmatpush1.msra.mxu0 %v397
    %445 = vmatprep.subr.mxu0 0.0
    %446 = vmatpush1.msra.mxu0 %v398
    %447 = vmatprep.subr.mxu0 0.0
    %448 = vmatpush1.msra.mxu0 %v399
    %449 = vmatprep.subr.mxu0 0.0
    %450 = vmatpush1.msra.mxu0 %v400
    %451 = vmatprep.subr.mxu0 0.0
    %452 = vmatpush1.msra.mxu0 %v401
    %453 = vmatprep.subr.mxu0 0.0
    %454 = vmatpush1.msra.mxu0 %v402
    %455 = vmatprep.subr.mxu0 0.0
    %456 = vmatpush1.msra.mxu0 %v403
    %457 = vmatprep.subr.mxu0 0.0
    %458 = vmatpush1.msra.mxu0 %v404
    %459 = vmatprep.subr.mxu0 0.0
    %460 = vmatpush1.msra.mxu0 %v405
    %461 = vmatprep.subr.mxu0 0.0
    %462 = vmatpush1.msra.mxu0 %v406
    %463 = vmatprep.subr.mxu0 0.0
    %464 = vmatpush1.msra.mxu0 %v407
    %465 = vmatprep.subr.mxu0 0.0
    %466 = vmatpush1.msra.mxu0 %v408
    %467 = vmatprep.subr.mxu0 0.0
    %468 = vmatpush1.msra.mxu0 %v409
    %469 = vmatprep.subr.mxu0 0.0
    %470 = vmatpush1.msra.mxu0 %v410
    %471 = vmatprep.subr.mxu0 0.0
    %472 = vmatpush1.msra.mxu0 %v411
    %473 = vmatprep.subr.mxu0 0.0
    %474 = vmatpush1.msra.mxu0 %v412
    %475 = vmatprep.subr.mxu0 0.0
    %476 = vmatpush1.msra.mxu0 %v413
    %477 = vmatprep.subr.mxu0 0.0
    %478 = vmatpush1.msra.mxu0 %v414
    %479 = vmatprep.subr.mxu0 0.0
    %480 = vmatpush1.msra.mxu0 %v415
    %481 = vmatprep.subr.mxu0 0.0
    %482 = vmatpush1.msra.mxu0 %v416
    %483 = vmatprep.mubr.f32.mxu0 %v382
    %484 = vmatmul.mubr.f32.gmra.mrb[0].mxu0 %v381
    %v485 = vpop.f32.mrb[0].mxu0
    %v486 = vadd.f32 %v418, %v485
    %v487 = vpop.f32.mrb[0].mxu0
    %488 = vmatprep.mubr.f32.mxu0 %v384
    %489 = vmatmul.mubr.f32.gmra.mrb[0].mxu0 %v383
    %v490 = vpop.f32.mrb[0].mxu0
    %v491 = vadd.f32 %v418, %v490
    %v492 = vpop.f32.mrb[0].mxu0
    %493 = vdwg.mxu0
    %v494 = vmul.f32 %v81, %v486
    %v495 = vmul.f32 %v82, %v491
    %496 = vst [vmem:[%s8] sm:$0xff] %v494
    %497 = vst [vmem:[%s8 + $0x8] sm:$0xff] %v495
    // Predicated region
    $region46: #{softmax_approx.1} parent=1 // pred_check
      _
    $region47: #{softmax_approx.1} parent=1 // pred_check_branch
      %499 = sbr.rel (0) target = $region49
    $region48: #{softmax_approx.1} parent=1 // pred_region
      _
    $region49: #{softmax_approx.1} parent=1 // pred_fallthru
      _
    // Predicated region
    $region50: #{softmax_approx.1} parent=1 // pred_check
      _
    $region51: #{softmax_approx.1} parent=1 // pred_check_branch
      %501 = sbr.rel (0) target = $region53
    $region52: #{softmax_approx.1} parent=1 // pred_region
      _
    $region53: #{softmax_approx.1} parent=1 // pred_fallthru
      _
    %502 = vsyncpa [#allocation4], 1
    %503 = vsyncpa [#allocation6], 1

</llo_original>
